<compile_context>
chip_gen: v6e
topology: v6e:2x2x1
jax: 0.10.0
libtpu: 0.0.40
codegen_flags: <defaults>
</compile_context>

<pallas_src>
import numpy as np
import jax
import jax.numpy as jnp
from jax.experimental import pallas as pl
from jax.experimental.pallas import tpu as pltpu


def _round_up(v, m):
    return (v + m - 1) // m * m


def _make_graph_filter_kernel(n_powers):
    """Kernel closed over the (static) length of the GSO power chain."""

    def kernel(st_ref, xs_ref, cband_ref, y_ref, vstack_ref):
        # st_ref:     (Np, Np) VMEM  -- zero-padded S^T (row-vector diffusion)
        # xs_ref:     (8,  Np) VMEM  -- row 0 = sum_f x[:, f], rows 1..7 zero
        # cband_ref:  (Op, Kp) VMEM  -- banded filter coefficients
        # y_ref:      (Op, Np) VMEM  -- output, lane-dense
        # vstack_ref: (Kp, Np) VMEM scratch -- stacked diffusion powers

        # Zero the power stack so the Kp-K padding rows cannot feed stale VMEM
        # (0 * NaN = NaN) into the final band matmul.
        vstack_ref[...] = jnp.zeros_like(vstack_ref)

        # Diffusion state carried in registers, lane-dense:
        #   v_k[0, :] = (S^k @ xs)^T, rows 1..7 stay zero through the chain.
        v = xs_ref[...]
        # n_powers = O*(T-1)+1 is small here, so a static unrolled chain is
        # fine; switch to lax.fori_loop with a dynamic pl.ds store if it grows.
        for k in range(n_powers):
            v = jnp.dot(v, st_ref[...], preferred_element_type=jnp.float32)
            vstack_ref[pl.ds(k, 1), :] = v[0:1, :]

        # One banded-coefficient matmul combines every tap of every output
        # feature; the (Op, Np) result is stored lane-dense and unmasked.
        y_ref[...] = jnp.dot(cband_ref[...], vstack_ref[...],
                             preferred_element_type=jnp.float32)

    return kernel


def graph_filtering_forward(gso_dict, filter_coeff, x, ind):
    """Equivalent of GraphFilteringLayer.forward(x, ind). Returns (nNodes, outFeat)."""
    # TODO(synk): torch.sparse.mm has no Pallas sparse equivalent; the GSO is
    # densified and each diffusion step runs as a dense matmul on the MXU.
    S = jnp.asarray(gso_dict[ind], jnp.float32)
    x = jnp.asarray(x, jnp.float32)
    coeff = jnp.asarray(filter_coeff, jnp.float32)

    N, _F = x.shape
    O, T = coeff.shape
    K = O * (T - 1) + 1            # number of distinct GSO powers actually used

    # Hardware-grain padding: lane axis (N) -> 128, sublane axes (O, K) -> 8.
    Np = _round_up(N, 128)
    Op = _round_up(O, 8)
    Kp = _round_up(K, 8)

    # Feature-sum hoist: sum over input features commutes with the filter.
    xs = jnp.sum(x, axis=1)                                       # (N,)
    xs_row = jnp.zeros((8, Np), jnp.float32).at[0, :N].set(xs)

    # Row-vector diffusion (v <- v @ S^T) keeps N on the lane axis.
    st = jnp.zeros((Np, Np), jnp.float32).at[:N, :N].set(S.T)

    # Banded coefficient matrix encoding the carried-power semantics of the
    # original torch loops: output o uses powers 1 + o*(T-1) + i, i = 0..T-1.
    rows = jnp.arange(O)[:, None]
    cols = rows * (T - 1) + jnp.arange(T)[None, :]
    cband = jnp.zeros((Op, Kp), jnp.float32).at[rows, cols].set(coeff)

    kernel = _make_graph_filter_kernel(K)

    y_pad = pl.pallas_call(
        kernel,
        grid=(1,),
        out_shape=jax.ShapeDtypeStruct((Op, Np), jnp.float32),
        in_specs=[
            pl.BlockSpec((Np, Np), lambda i: (0, 0)),   # S^T (dense, padded)
            pl.BlockSpec((8, Np), lambda i: (0, 0)),    # summed signal row
            pl.BlockSpec((Op, Kp), lambda i: (0, 0)),   # banded coefficients
        ],
        out_specs=pl.BlockSpec((Op, Np), lambda i: (0, 0)),
        scratch_shapes=[pltpu.VMEM((Kp, Np), jnp.float32)],
        compiler_params=pltpu.CompilerParams(
            dimension_semantics=("arbitrary",)),
    )(st, xs_row, cband)

    # TODO(synk): for large N, stream S in row blocks over a pipelined grid
    # (set vmem_limit_bytes explicitly for v7x's 64 MiB VMEM) and batch
    # independent (GSO, x) pairs on a leading "parallel" axis for the second
    # TensorCore; at these shapes a single resident block is optimal.
    return y_pad[:O, :N].T     # (nNodes, numOutFeatures), float32


def reference_forward(S, filter_coeff, x):
    """Pure-numpy transcription of the torch loops (incl. carried GSOTimesVectors)."""
    S = np.asarray(S, np.float32)
    coeff = np.asarray(filter_coeff, np.float32)
    X = np.asarray(x, np.float32)
    N, F = X.shape
    O, T = coeff.shape
    y = np.zeros((N, O, F), np.float32)
    for f in range(F):
        v = S @ X[:, f:f + 1]
        for o in range(O):
            tmp = np.zeros((N, 1), np.float32)
            for i in range(T):
                tmp = tmp + coeff[o, i] * v
                if i != T - 1:
                    v = S @ v
            y[:, o, f] = tmp[:, 0]
    return y.sum(axis=2)


if __name__ == "__main__":
    N, F, O, T = 64, 8, 4, 3   # nNodes, numInFeatures, outFeat, order

    key = jax.random.PRNGKey(0)
    k1, k2, k3, k4 = jax.random.split(key, 4)

    def make_gso(k):
        ka, kb = jax.random.split(k)
        vals = jax.random.normal(ka, (N, N), jnp.float32)
        mask = (jax.random.uniform(kb, (N, N)) < 0.2).astype(jnp.float32)
        return (vals * mask) / jnp.float32(N)   # sparse-ish, well-scaled GSO

    gso_dict = {0: make_gso(k1), 1: make_gso(k2)}

    # deterministic parameter init (torch: randn(outFeat, order) * 0.1)
    filter_coeff = 0.1 * jax.random.normal(k3, (O, T), jnp.float32)
    x = jax.random.normal(k4, (N, F), jnp.float32)

    y = graph_filtering_forward(gso_dict, filter_coeff, x, ind=0)
    y = jax.block_until_ready(y)

    y_ref = reference_forward(gso_dict[0], filter_coeff, x)
    assert y.shape == (N, O)
    assert np.allclose(np.asarray(y), y_ref, rtol=1e-4, atol=1e-5), \
        "Pallas kernel does not match reference"

    print("KERNEL_OK")
</pallas_src>

<mosaic_0001>
module attributes {stable_mosaic.version = 11 : i64} {
  func.func @kernel(%arg0: i32, %arg1: memref<128x128xf32, #tpu.memory_space<vmem>>, %arg2: memref<8x128xf32, #tpu.memory_space<vmem>>, %arg3: memref<8x16xf32, #tpu.memory_space<vmem>>, %arg4: memref<8x128xf32, #tpu.memory_space<vmem>>, %arg5: memref<16x128xf32, #tpu.memory_space<vmem>>) attributes {dimension_semantics = [#tpu.dimension_semantics<arbitrary>], iteration_bounds = array<i64: 1>, scalar_prefetch = 0 : i64, scratch_operands = 1 : i64, tpu.core_type = #tpu.core_type<tc>, window_params = [{pipeline_mode = #tpu.pipeline_mode<synchronous>, transform_indices = @transform_0, window_bounds = array<i64: 128, 128>}, {pipeline_mode = #tpu.pipeline_mode<synchronous>, transform_indices = @transform_1, window_bounds = array<i64: 8, 128>}, {pipeline_mode = #tpu.pipeline_mode<synchronous>, transform_indices = @transform_2, window_bounds = array<i64: 8, 16>}, {pipeline_mode = #tpu.pipeline_mode<synchronous>, transform_indices = @transform_3, window_bounds = array<i64: 8, 128>}]} {
    %cst = arith.constant 0.000000e+00 : f32
    %0 = vector.broadcast %cst : f32 to vector<16x128xf32>
    %c0 = arith.constant 0 : index
    %c0_0 = arith.constant 0 : index
    %1 = vector.load %arg5[%c0, %c0_0] : memref<16x128xf32, #tpu.memory_space<vmem>>, vector<16x128xf32>
    tpu.vector_store %arg5[%c0, %c0_0], %0 {strides = array<i32>} : memref<16x128xf32, #tpu.memory_space<vmem>>, vector<16x128xf32>,
    %c0_1 = arith.constant 0 : index
    %c0_2 = arith.constant 0 : index
    %2 = vector.load %arg2[%c0_1, %c0_2] : memref<8x128xf32, #tpu.memory_space<vmem>>, vector<8x128xf32>
    %c0_3 = arith.constant 0 : index
    %c0_4 = arith.constant 0 : index
    %3 = vector.load %arg1[%c0_3, %c0_4] : memref<128x128xf32, #tpu.memory_space<vmem>>, vector<128x128xf32>
    %cst_5 = arith.constant dense<0.000000e+00> : vector<8x128xf32>
    %4 = tpu.matmul %2, %3, %cst_5 {dimension_numbers = #tpu.dot_dimension_numbers<[1], [0], [0], [1], [0, 0, 1, 1], [], []>} : vector<8x128xf32>, vector<128x128xf32>, vector<8x128xf32> -> vector<8x128xf32>
    %5 = vector.extract_strided_slice %4 {offsets = [0, 0], sizes = [1, 128], strides = [1, 1]} : vector<8x128xf32> to vector<1x128xf32>
    %c0_6 = arith.constant 0 : index
    %c0_7 = arith.constant 0 : index
    %6 = vector.load %arg5[%c0_6, %c0_7] : memref<16x128xf32, #tpu.memory_space<vmem>>, vector<1x128xf32>
    tpu.vector_store %arg5[%c0_6, %c0_7], %5 {strides = array<i32>} : memref<16x128xf32, #tpu.memory_space<vmem>>, vector<1x128xf32>,
    %c0_8 = arith.constant 0 : index
    %c0_9 = arith.constant 0 : index
    %7 = vector.load %arg1[%c0_8, %c0_9] : memref<128x128xf32, #tpu.memory_space<vmem>>, vector<128x128xf32>
    %cst_10 = arith.constant dense<0.000000e+00> : vector<8x128xf32>
    %8 = tpu.matmul %4, %7, %cst_10 {dimension_numbers = #tpu.dot_dimension_numbers<[1], [0], [0], [1], [0, 0, 1, 1], [], []>} : vector<8x128xf32>, vector<128x128xf32>, vector<8x128xf32> -> vector<8x128xf32>
    %9 = vector.extract_strided_slice %8 {offsets = [0, 0], sizes = [1, 128], strides = [1, 1]} : vector<8x128xf32> to vector<1x128xf32>
    %c1 = arith.constant 1 : index
    %c0_11 = arith.constant 0 : index
    %10 = vector.load %arg5[%c1, %c0_11] : memref<16x128xf32, #tpu.memory_space<vmem>>, vector<1x128xf32>
    tpu.vector_store %arg5[%c1, %c0_11], %9 {strides = array<i32>} : memref<16x128xf32, #tpu.memory_space<vmem>>, vector<1x128xf32>,
    %c0_12 = arith.constant 0 : index
    %c0_13 = arith.constant 0 : index
    %11 = vector.load %arg1[%c0_12, %c0_13] : memref<128x128xf32, #tpu.memory_space<vmem>>, vector<128x128xf32>
    %cst_14 = arith.constant dense<0.000000e+00> : vector<8x128xf32>
    %12 = tpu.matmul %8, %11, %cst_14 {dimension_numbers = #tpu.dot_dimension_numbers<[1], [0], [0], [1], [0, 0, 1, 1], [], []>} : vector<8x128xf32>, vector<128x128xf32>, vector<8x128xf32> -> vector<8x128xf32>
    %13 = vector.extract_strided_slice %12 {offsets = [0, 0], sizes = [1, 128], strides = [1, 1]} : vector<8x128xf32> to vector<1x128xf32>
    %c2 = arith.constant 2 : index
    %c0_15 = arith.constant 0 : index
    %14 = vector.load %arg5[%c2, %c0_15] : memref<16x128xf32, #tpu.memory_space<vmem>>, vector<1x128xf32>
    tpu.vector_store %arg5[%c2, %c0_15], %13 {strides = array<i32>} : memref<16x128xf32, #tpu.memory_space<vmem>>, vector<1x128xf32>,
    %c0_16 = arith.constant 0 : index
    %c0_17 = arith.constant 0 : index
    %15 = vector.load %arg1[%c0_16, %c0_17] : memref<128x128xf32, #tpu.memory_space<vmem>>, vector<128x128xf32>
    %cst_18 = arith.constant dense<0.000000e+00> : vector<8x128xf32>
    %16 = tpu.matmul %12, %15, %cst_18 {dimension_numbers = #tpu.dot_dimension_numbers<[1], [0], [0], [1], [0, 0, 1, 1], [], []>} : vector<8x128xf32>, vector<128x128xf32>, vector<8x128xf32> -> vector<8x128xf32>
    %17 = vector.extract_strided_slice %16 {offsets = [0, 0], sizes = [1, 128], strides = [1, 1]} : vector<8x128xf32> to vector<1x128xf32>
    %c3 = arith.constant 3 : index
    %c0_19 = arith.constant 0 : index
    %18 = vector.load %arg5[%c3, %c0_19] : memref<16x128xf32, #tpu.memory_space<vmem>>, vector<1x128xf32>
    tpu.vector_store %arg5[%c3, %c0_19], %17 {strides = array<i32>} : memref<16x128xf32, #tpu.memory_space<vmem>>, vector<1x128xf32>,
    %c0_20 = arith.constant 0 : index
    %c0_21 = arith.constant 0 : index
    %19 = vector.load %arg1[%c0_20, %c0_21] : memref<128x128xf32, #tpu.memory_space<vmem>>, vector<128x128xf32>
    %cst_22 = arith.constant dense<0.000000e+00> : vector<8x128xf32>
    %20 = tpu.matmul %16, %19, %cst_22 {dimension_numbers = #tpu.dot_dimension_numbers<[1], [0], [0], [1], [0, 0, 1, 1], [], []>} : vector<8x128xf32>, vector<128x128xf32>, vector<8x128xf32> -> vector<8x128xf32>
    %21 = vector.extract_strided_slice %20 {offsets = [0, 0], sizes = [1, 128], strides = [1, 1]} : vector<8x128xf32> to vector<1x128xf32>
    %c4 = arith.constant 4 : index
    %c0_23 = arith.constant 0 : index
    %22 = vector.load %arg5[%c4, %c0_23] : memref<16x128xf32, #tpu.memory_space<vmem>>, vector<1x128xf32>
    tpu.vector_store %arg5[%c4, %c0_23], %21 {strides = array<i32>} : memref<16x128xf32, #tpu.memory_space<vmem>>, vector<1x128xf32>,
    %c0_24 = arith.constant 0 : index
    %c0_25 = arith.constant 0 : index
    %23 = vector.load %arg1[%c0_24, %c0_25] : memref<128x128xf32, #tpu.memory_space<vmem>>, vector<128x128xf32>
    %cst_26 = arith.constant dense<0.000000e+00> : vector<8x128xf32>
    %24 = tpu.matmul %20, %23, %cst_26 {dimension_numbers = #tpu.dot_dimension_numbers<[1], [0], [0], [1], [0, 0, 1, 1], [], []>} : vector<8x128xf32>, vector<128x128xf32>, vector<8x128xf32> -> vector<8x128xf32>
    %25 = vector.extract_strided_slice %24 {offsets = [0, 0], sizes = [1, 128], strides = [1, 1]} : vector<8x128xf32> to vector<1x128xf32>
    %c5 = arith.constant 5 : index
    %c0_27 = arith.constant 0 : index
    %26 = vector.load %arg5[%c5, %c0_27] : memref<16x128xf32, #tpu.memory_space<vmem>>, vector<1x128xf32>
    tpu.vector_store %arg5[%c5, %c0_27], %25 {strides = array<i32>} : memref<16x128xf32, #tpu.memory_space<vmem>>, vector<1x128xf32>,
    %c0_28 = arith.constant 0 : index
    %c0_29 = arith.constant 0 : index
    %27 = vector.load %arg1[%c0_28, %c0_29] : memref<128x128xf32, #tpu.memory_space<vmem>>, vector<128x128xf32>
    %cst_30 = arith.constant dense<0.000000e+00> : vector<8x128xf32>
    %28 = tpu.matmul %24, %27, %cst_30 {dimension_numbers = #tpu.dot_dimension_numbers<[1], [0], [0], [1], [0, 0, 1, 1], [], []>} : vector<8x128xf32>, vector<128x128xf32>, vector<8x128xf32> -> vector<8x128xf32>
    %29 = vector.extract_strided_slice %28 {offsets = [0, 0], sizes = [1, 128], strides = [1, 1]} : vector<8x128xf32> to vector<1x128xf32>
    %c6 = arith.constant 6 : index
    %c0_31 = arith.constant 0 : index
    %30 = vector.load %arg5[%c6, %c0_31] : memref<16x128xf32, #tpu.memory_space<vmem>>, vector<1x128xf32>
    tpu.vector_store %arg5[%c6, %c0_31], %29 {strides = array<i32>} : memref<16x128xf32, #tpu.memory_space<vmem>>, vector<1x128xf32>,
    %c0_32 = arith.constant 0 : index
    %c0_33 = arith.constant 0 : index
    %31 = vector.load %arg1[%c0_32, %c0_33] : memref<128x128xf32, #tpu.memory_space<vmem>>, vector<128x128xf32>
    %cst_34 = arith.constant dense<0.000000e+00> : vector<8x128xf32>
    %32 = tpu.matmul %28, %31, %cst_34 {dimension_numbers = #tpu.dot_dimension_numbers<[1], [0], [0], [1], [0, 0, 1, 1], [], []>} : vector<8x128xf32>, vector<128x128xf32>, vector<8x128xf32> -> vector<8x128xf32>
    %33 = vector.extract_strided_slice %32 {offsets = [0, 0], sizes = [1, 128], strides = [1, 1]} : vector<8x128xf32> to vector<1x128xf32>
    %c7 = arith.constant 7 : index
    %c0_35 = arith.constant 0 : index
    %34 = vector.load %arg5[%c7, %c0_35] : memref<16x128xf32, #tpu.memory_space<vmem>>, vector<1x128xf32>
    tpu.vector_store %arg5[%c7, %c0_35], %33 {strides = array<i32>} : memref<16x128xf32, #tpu.memory_space<vmem>>, vector<1x128xf32>,
    %c0_36 = arith.constant 0 : index
    %c0_37 = arith.constant 0 : index
    %35 = vector.load %arg1[%c0_36, %c0_37] : memref<128x128xf32, #tpu.memory_space<vmem>>, vector<128x128xf32>
    %cst_38 = arith.constant dense<0.000000e+00> : vector<8x128xf32>
    %36 = tpu.matmul %32, %35, %cst_38 {dimension_numbers = #tpu.dot_dimension_numbers<[1], [0], [0], [1], [0, 0, 1, 1], [], []>} : vector<8x128xf32>, vector<128x128xf32>, vector<8x128xf32> -> vector<8x128xf32>
    %37 = vector.extract_strided_slice %36 {offsets = [0, 0], sizes = [1, 128], strides = [1, 1]} : vector<8x128xf32> to vector<1x128xf32>
    %c8 = arith.constant 8 : index
    %c0_39 = arith.constant 0 : index
    %38 = vector.load %arg5[%c8, %c0_39] : memref<16x128xf32, #tpu.memory_space<vmem>>, vector<1x128xf32>
    tpu.vector_store %arg5[%c8, %c0_39], %37 {strides = array<i32>} : memref<16x128xf32, #tpu.memory_space<vmem>>, vector<1x128xf32>,
    %c0_40 = arith.constant 0 : index
    %c0_41 = arith.constant 0 : index
    %39 = vector.load %arg3[%c0_40, %c0_41] : memref<8x16xf32, #tpu.memory_space<vmem>>, vector<8x16xf32>
    %c0_42 = arith.constant 0 : index
    %c0_43 = arith.constant 0 : index
    %40 = vector.load %arg5[%c0_42, %c0_43] : memref<16x128xf32, #tpu.memory_space<vmem>>, vector<16x128xf32>
    %cst_44 = arith.constant dense<0.000000e+00> : vector<8x128xf32>
    %41 = tpu.matmul %39, %40, %cst_44 {dimension_numbers = #tpu.dot_dimension_numbers<[1], [0], [0], [1], [0, 0, 1, 1], [], []>} : vector<8x16xf32>, vector<16x128xf32>, vector<8x128xf32> -> vector<8x128xf32>
    %c0_45 = arith.constant 0 : index
    %c0_46 = arith.constant 0 : index
    %42 = vector.load %arg4[%c0_45, %c0_46] : memref<8x128xf32, #tpu.memory_space<vmem>>, vector<8x128xf32>
    tpu.vector_store %arg4[%c0_45, %c0_46], %41 {strides = array<i32>} : memref<8x128xf32, #tpu.memory_space<vmem>>, vector<8x128xf32>,
    return
  }
  func.func @transform_0(%arg0: i32) -> (i32, i32) {
    %c0_i32 = arith.constant 0 : i32
    %c0_i32_0 = arith.constant 0 : i32
    %c0_i32_1 = arith.constant 0 : i32
    return %c0_i32, %c0_i32_0 : i32, i32
  }
  func.func @transform_1(%arg0: i32) -> (i32, i32) {
    %c0_i32 = arith.constant 0 : i32
    %c0_i32_0 = arith.constant 0 : i32
    %c0_i32_1 = arith.constant 0 : i32
    return %c0_i32, %c0_i32_0 : i32, i32
  }
  func.func @transform_2(%arg0: i32) -> (i32, i32) {
    %c0_i32 = arith.constant 0 : i32
    %c0_i32_0 = arith.constant 0 : i32
    %c0_i32_1 = arith.constant 0 : i32
    return %c0_i32, %c0_i32_0 : i32, i32
  }
  func.func @transform_3(%arg0: i32) -> (i32, i32) {
    %c0_i32 = arith.constant 0 : i32
    %c0_i32_0 = arith.constant 0 : i32
    %c0_i32_1 = arith.constant 0 : i32
    return %c0_i32, %c0_i32_0 : i32, i32
  }
}

</mosaic_0001>

<llo_original>
// kernel: tpu_custom_call.1
$region0: #{tpu_custom_call.1}
  #allocation0 [shape = 'u32[]', space=smem, size = 0x4, offset = 0x4, fixed_abs, tag = 'smem constant byte address 0x4 - core index']
  #allocation1 [shape = 'u32[144,128]{1,0:T(1,128)}', space=vmem, size = 0x12000, scoped, tag = 'internal scratch']
  #allocation2 [shape = 'f32[16,128]{1,0:T(8,128)}', space=vmem, size = 0x2000, scoped, tag = 'scratch operand']
  %s0 = inlined_call_operand.hbm [shape: f32[128,128], index: 0, kind: input, shape index: {}]
  %s1 = inlined_call_operand.hbm [shape: f32[8,128], index: 1, kind: input, shape index: {}]
  %s2 = inlined_call_operand.hbm [shape: f32[8,16], index: 2, kind: input, shape index: {}]
  %s3 = inlined_call_operand.hbm [shape: f32[8,128], index: 3, kind: output, shape index: {}]
  %s4 = sld [smem:[#allocation0]]
  $region34: #{tpu_custom_call.1} parent=0
    _
  %s6 = ssub.s32 1, %s4
  %s7 = scalar_select 0, %s6, %s4
  $region1: #{tpu_custom_call.1} parent=0
    #allocation3 [shape = 'u8[65536]{0}', space=vmem, size = 0x10000, scoped, tag = 'input window, operand 0, single buffered']
    #allocation4 [shape = 's32[1]{0}', space=sflag, size = 0x4, scoped, tag = 'scoped memory for tpu_custom_call.1']
    #allocation5 [shape = 's32[1]{0}', space=sflag, size = 0x4, scoped, tag = 'scoped memory for tpu_custom_call.1']
    #allocation6 [shape = 'u8[4096]{0}', space=vmem, size = 0x1000, scoped, tag = 'input window, operand 1, single buffered']
    #allocation7 [shape = 's32[1]{0}', space=sflag, size = 0x4, scoped, tag = 'scoped memory for tpu_custom_call.1']
    #allocation8 [shape = 'u8[4096]{0}', space=vmem, size = 0x1000, scoped, tag = 'input window, operand 2, single buffered']
    #allocation9 [shape = 'u8[4096]{0}', space=vmem, size = 0x1000, scoped, tag = 'output window, operand 0, single buffered']
    %8 = vsyncpa [#allocation4], 0
    %9 = vsyncpa [#allocation7], 0
    %10 = vsyncpa [#allocation5], 0
    // Predicated region
    $region2: #{tpu_custom_call.1} parent=1 // pred_check
      _
    $region3: #{tpu_custom_call.1} parent=1 // pred_check_branch
      %12 = sbr.rel (0) target = $region5
    $region4: #{tpu_custom_call.1} parent=1 // pred_region
      %s14 = ssub.s32 2048, 2048
      %15 = vsyncadd [#allocation4], %s14
      %s16 = sshll.u32 [#allocation3], 4
      %s17 = int_to_ptr.vmem [resolvable:$true] %s16
      %22 = dma.hbm_to_vmem [thread:$0]  %s0, 2048, %s17, [#allocation4], 128, 128, 8
    $region5: #{tpu_custom_call.1} parent=1 // pred_fallthru
      _
    // Predicated region
    $region6: #{tpu_custom_call.1} parent=1 // pred_check
      _
    $region7: #{tpu_custom_call.1} parent=1 // pred_check_branch
      %24 = sbr.rel (0) target = $region9
    $region8: #{tpu_custom_call.1} parent=1 // pred_region
      %s26 = ssub.s32 128, 128
      %27 = vsyncadd [#allocation7], %s26
      %s29 = sshll.u32 [#allocation6], 4
      %s30 = int_to_ptr.vmem [resolvable:$true] %s29
      %32 = dma.hbm_to_vmem [thread:$0]  %s1, 128, %s30, [#allocation7]
    $region9: #{tpu_custom_call.1} parent=1 // pred_fallthru
      _
    // Predicated region
    $region10: #{tpu_custom_call.1} parent=1 // pred_check
      _
    $region11: #{tpu_custom_call.1} parent=1 // pred_check_branch
      %34 = sbr.rel (0) target = $region13
    $region12: #{tpu_custom_call.1} parent=1 // pred_region
      %s36 = ssub.s32 128, 128
      %37 = vsyncadd [#allocation7], %s36
      %s39 = sshll.u32 [#allocation8], 4
      %s40 = int_to_ptr.vmem [resolvable:$true] %s39
      %42 = dma.hbm_to_vmem [thread:$0]  %s2, 128, %s40, [#allocation7]
    $region13: #{tpu_custom_call.1} parent=1 // pred_fallthru
      _
    // Predicated region
    $region14: #{tpu_custom_call.1} parent=1 // pred_check
      _
    $region15: #{tpu_custom_call.1} parent=1 // pred_check_branch
      %44 = sbr.rel (0) target = $region17
    $region16: #{tpu_custom_call.1} parent=1 // pred_region
      %45 = dma.done [#allocation4], 2048
    $region17: #{tpu_custom_call.1} parent=1 // pred_fallthru
      _
    // Predicated region
    $region18: #{tpu_custom_call.1} parent=1 // pred_check
      _
    $region19: #{tpu_custom_call.1} parent=1 // pred_check_branch
      %47 = sbr.rel (0) target = $region21
    $region20: #{tpu_custom_call.1} parent=1 // pred_region
      %48 = dma.done [#allocation7], 128
    $region21: #{tpu_custom_call.1} parent=1 // pred_fallthru
      _
    // Predicated region
    $region22: #{tpu_custom_call.1} parent=1 // pred_check
      _
    $region23: #{tpu_custom_call.1} parent=1 // pred_check_branch
      %50 = sbr.rel (0) target = $region25
    $region24: #{tpu_custom_call.1} parent=1 // pred_region
      %51 = dma.done [#allocation7], 128
    $region25: #{tpu_custom_call.1} parent=1 // pred_fallthru
      _
    %52 = vst [vmem:[#allocation2] sm:$0xff] 0.0
    %53 = vst [vmem:[#allocation2 + $0x8] sm:$0xff] 0.0
    %v54 = vld [vmem:[#allocation6] sm:$0xff]
    %v55 = vld [vmem:[#allocation3] sm:$0xff]
    %v56 = vld [vmem:[#allocation3 + $0x8] sm:$0xff]
    %v57 = vld [vmem:[#allocation3 + $0x10] sm:$0xff]
    %v58 = vld [vmem:[#allocation3 + $0x18] sm:$0xff]
    %v59 = vld [vmem:[#allocation3 + $0x20] sm:$0xff]
    %v60 = vld [vmem:[#allocation3 + $0x28] sm:$0xff]
    %v61 = vld [vmem:[#allocation3 + $0x30] sm:$0xff]
    %v62 = vld [vmem:[#allocation3 + $0x38] sm:$0xff]
    %v63 = vld [vmem:[#allocation3 + $0x40] sm:$0xff]
    %v64 = vld [vmem:[#allocation3 + $0x48] sm:$0xff]
    %v65 = vld [vmem:[#allocation3 + $0x50] sm:$0xff]
    %v66 = vld [vmem:[#allocation3 + $0x58] sm:$0xff]
    %v67 = vld [vmem:[#allocation3 + $0x60] sm:$0xff]
    %v68 = vld [vmem:[#allocation3 + $0x68] sm:$0xff]
    %v69 = vld [vmem:[#allocation3 + $0x70] sm:$0xff]
    %v70 = vld [vmem:[#allocation3 + $0x78] sm:$0xff]
    %71 = vmatprep.subr.mxu0 0.0
    %72 = vmatpush1.msra.mxu0 %v70
    %73 = vmatprep.subr.mxu0 0.0
    %74 = vmatpush1.msra.mxu0 %v69
    %75 = vmatprep.subr.mxu0 0.0
    %76 = vmatpush1.msra.mxu0 %v68
    %77 = vmatprep.subr.mxu0 0.0
    %78 = vmatpush1.msra.mxu0 %v67
    %79 = vmatprep.subr.mxu0 0.0
    %80 = vmatpush1.msra.mxu0 %v66
    %81 = vmatprep.subr.mxu0 0.0
    %82 = vmatpush1.msra.mxu0 %v65
    %83 = vmatprep.subr.mxu0 0.0
    %84 = vmatpush1.msra.mxu0 %v64
    %85 = vmatprep.subr.mxu0 0.0
    %86 = vmatpush1.msra.mxu0 %v63
    %87 = vmatprep.subr.mxu0 0.0
    %88 = vmatpush1.msra.mxu0 %v62
    %89 = vmatprep.subr.mxu0 0.0
    %90 = vmatpush1.msra.mxu0 %v61
    %91 = vmatprep.subr.mxu0 0.0
    %92 = vmatpush1.msra.mxu0 %v60
    %93 = vmatprep.subr.mxu0 0.0
    %94 = vmatpush1.msra.mxu0 %v59
    %95 = vmatprep.subr.mxu0 0.0
    %96 = vmatpush1.msra.mxu0 %v58
    %97 = vmatprep.subr.mxu0 0.0
    %98 = vmatpush1.msra.mxu0 %v57
    %99 = vmatprep.subr.mxu0 0.0
    %100 = vmatpush1.msra.mxu0 %v56
    %101 = vmatprep.subr.mxu0 0.0
    %102 = vmatpush1.msra.mxu0 %v55
    %103 = vmatprep.subr.mxu0 0.0
    %104 = vmatpush2.msra.mxu0 0.0
    %105 = vmatprep.subr.mxu0 0.0
    %106 = vmatpush2.msra.mxu0 0.0
    %107 = vmatprep.subr.mxu0 0.0
    %108 = vmatpush2.msra.mxu0 0.0
    %109 = vmatprep.subr.mxu0 0.0
    %110 = vmatpush2.msra.mxu0 0.0
    %111 = vmatprep.subr.mxu0 0.0
    %112 = vmatpush2.msra.mxu0 0.0
    %113 = vmatprep.subr.mxu0 0.0
    %114 = vmatpush2.msra.mxu0 0.0
    %115 = vmatprep.subr.mxu0 0.0
    %116 = vmatpush2.msra.mxu0 0.0
    %117 = vmatprep.subr.mxu0 0.0
    %118 = vmatpush2.msra.mxu0 0.0
    %119 = vmatprep.subr.mxu0 0.0
    %120 = vmatpush2.msra.mxu0 0.0
    %121 = vmatprep.subr.mxu0 0.0
    %122 = vmatpush2.msra.mxu0 0.0
    %123 = vmatprep.subr.mxu0 0.0
    %124 = vmatpush2.msra.mxu0 0.0
    %125 = vmatprep.subr.mxu0 0.0
    %126 = vmatpush2.msra.mxu0 0.0
    %127 = vmatprep.subr.mxu0 0.0
    %128 = vmatpush2.msra.mxu0 0.0
    %129 = vmatprep.subr.mxu0 0.0
    %130 = vmatpush2.msra.mxu0 0.0
    %131 = vmatprep.subr.mxu0 0.0
    %132 = vmatpush2.msra.mxu0 0.0
    %133 = vmatprep.subr.mxu0 0.0
    %134 = vmatpush2.msra.mxu0 0.0
    %135 = vmatprep.mubr.f32.mxu0 0.0
    %136 = vmatmul.mubr.f32.gmra.mxu0 %v54
    %v137 = vpop.f32.mrf.mxu0
    %v138 = vadd.f32 0.0, %v137
    %v139 = vpop.f32.mrf.mxu0
    %140 = vdwg.mxu0
    %141 = vst [vmem:[#allocation2] sm:$0x1] %v138
    %v142 = vld [vmem:[#allocation3] sm:$0xff]
    %v143 = vld [vmem:[#allocation3 + $0x8] sm:$0xff]
    %v144 = vld [vmem:[#allocation3 + $0x10] sm:$0xff]
    %v145 = vld [vmem:[#allocation3 + $0x18] sm:$0xff]
    %v146 = vld [vmem:[#allocation3 + $0x20] sm:$0xff]
    %v147 = vld [vmem:[#allocation3 + $0x28] sm:$0xff]
    %v148 = vld [vmem:[#allocation3 + $0x30] sm:$0xff]
    %v149 = vld [vmem:[#allocation3 + $0x38] sm:$0xff]
    %v150 = vld [vmem:[#allocation3 + $0x40] sm:$0xff]
    %v151 = vld [vmem:[#allocation3 + $0x48] sm:$0xff]
    %v152 = vld [vmem:[#allocation3 + $0x50] sm:$0xff]
    %v153 = vld [vmem:[#allocation3 + $0x58] sm:$0xff]
    %v154 = vld [vmem:[#allocation3 + $0x60] sm:$0xff]
    %v155 = vld [vmem:[#allocation3 + $0x68] sm:$0xff]
    %v156 = vld [vmem:[#allocation3 + $0x70] sm:$0xff]
    %v157 = vld [vmem:[#allocation3 + $0x78] sm:$0xff]
    %158 = vmatprep.subr.mxu0 0.0
    %159 = vmatpush1.msra.mxu0 %v157
    %160 = vmatprep.subr.mxu0 0.0
    %161 = vmatpush1.msra.mxu0 %v156
    %162 = vmatprep.subr.mxu0 0.0
    %163 = vmatpush1.msra.mxu0 %v155
    %164 = vmatprep.subr.mxu0 0.0
    %165 = vmatpush1.msra.mxu0 %v154
    %166 = vmatprep.subr.mxu0 0.0
    %167 = vmatpush1.msra.mxu0 %v153
    %168 = vmatprep.subr.mxu0 0.0
    %169 = vmatpush1.msra.mxu0 %v152
    %170 = vmatprep.subr.mxu0 0.0
    %171 = vmatpush1.msra.mxu0 %v151
    %172 = vmatprep.subr.mxu0 0.0
    %173 = vmatpush1.msra.mxu0 %v150
    %174 = vmatprep.subr.mxu0 0.0
    %175 = vmatpush1.msra.mxu0 %v149
    %176 = vmatprep.subr.mxu0 0.0
    %177 = vmatpush1.msra.mxu0 %v148
    %178 = vmatprep.subr.mxu0 0.0
    %179 = vmatpush1.msra.mxu0 %v147
    %180 = vmatprep.subr.mxu0 0.0
    %181 = vmatpush1.msra.mxu0 %v146
    %182 = vmatprep.subr.mxu0 0.0
    %183 = vmatpush1.msra.mxu0 %v145
    %184 = vmatprep.subr.mxu0 0.0
    %185 = vmatpush1.msra.mxu0 %v144
    %186 = vmatprep.subr.mxu0 0.0
    %187 = vmatpush1.msra.mxu0 %v143
    %188 = vmatprep.subr.mxu0 0.0
    %189 = vmatpush1.msra.mxu0 %v142
    %190 = vmatprep.subr.mxu0 0.0
    %191 = vmatpush2.msra.mxu0 0.0
    %192 = vmatprep.subr.mxu0 0.0
    %193 = vmatpush2.msra.mxu0 0.0
    %194 = vmatprep.subr.mxu0 0.0
    %195 = vmatpush2.msra.mxu0 0.0
    %196 = vmatprep.subr.mxu0 0.0
    %197 = vmatpush2.msra.mxu0 0.0
    %198 = vmatprep.subr.mxu0 0.0
    %199 = vmatpush2.msra.mxu0 0.0
    %200 = vmatprep.subr.mxu0 0.0
    %201 = vmatpush2.msra.mxu0 0.0
    %202 = vmatprep.subr.mxu0 0.0
    %203 = vmatpush2.msra.mxu0 0.0
    %204 = vmatprep.subr.mxu0 0.0
    %205 = vmatpush2.msra.mxu0 0.0
    %206 = vmatprep.subr.mxu0 0.0
    %207 = vmatpush2.msra.mxu0 0.0
    %208 = vmatprep.subr.mxu0 0.0
    %209 = vmatpush2.msra.mxu0 0.0
    %210 = vmatprep.subr.mxu0 0.0
    %211 = vmatpush2.msra.mxu0 0.0
    %212 = vmatprep.subr.mxu0 0.0
    %213 = vmatpush2.msra.mxu0 0.0
    %214 = vmatprep.subr.mxu0 0.0
    %215 = vmatpush2.msra.mxu0 0.0
    %216 = vmatprep.subr.mxu0 0.0
    %217 = vmatpush2.msra.mxu0 0.0
    %218 = vmatprep.subr.mxu0 0.0
    %219 = vmatpush2.msra.mxu0 0.0
    %220 = vmatprep.subr.mxu0 0.0
    %221 = vmatpush2.msra.mxu0 0.0
    %222 = vmatprep.mubr.f32.mxu0 0.0
    %223 = vmatmul.mubr.f32.gmra.mxu0 %v138
    %v224 = vpop.f32.mrf.mxu0
    %v225 = vadd.f32 0.0, %v224
    %v226 = vpop.f32.mrf.mxu0
    %227 = vdwg.mxu0
    %228 = vst [vmem:[#allocation2 + $0x1] sm:$0x1] %v225
    %v229 = vld [vmem:[#allocation3] sm:$0xff]
    %v230 = vld [vmem:[#allocation3 + $0x8] sm:$0xff]
    %v231 = vld [vmem:[#allocation3 + $0x10] sm:$0xff]
    %v232 = vld [vmem:[#allocation3 + $0x18] sm:$0xff]
    %v233 = vld [vmem:[#allocation3 + $0x20] sm:$0xff]
    %v234 = vld [vmem:[#allocation3 + $0x28] sm:$0xff]
    %v235 = vld [vmem:[#allocation3 + $0x30] sm:$0xff]
    %v236 = vld [vmem:[#allocation3 + $0x38] sm:$0xff]
    %v237 = vld [vmem:[#allocation3 + $0x40] sm:$0xff]
    %v238 = vld [vmem:[#allocation3 + $0x48] sm:$0xff]
    %v239 = vld [vmem:[#allocation3 + $0x50] sm:$0xff]
    %v240 = vld [vmem:[#allocation3 + $0x58] sm:$0xff]
    %v241 = vld [vmem:[#allocation3 + $0x60] sm:$0xff]
    %v242 = vld [vmem:[#allocation3 + $0x68] sm:$0xff]
    %v243 = vld [vmem:[#allocation3 + $0x70] sm:$0xff]
    %v244 = vld [vmem:[#allocation3 + $0x78] sm:$0xff]
    %245 = vmatprep.subr.mxu0 0.0
    %246 = vmatpush1.msra.mxu0 %v244
    %247 = vmatprep.subr.mxu0 0.0
    %248 = vmatpush1.msra.mxu0 %v243
    %249 = vmatprep.subr.mxu0 0.0
    %250 = vmatpush1.msra.mxu0 %v242
    %251 = vmatprep.subr.mxu0 0.0
    %252 = vmatpush1.msra.mxu0 %v241
    %253 = vmatprep.subr.mxu0 0.0
    %254 = vmatpush1.msra.mxu0 %v240
    %255 = vmatprep.subr.mxu0 0.0
    %256 = vmatpush1.msra.mxu0 %v239
    %257 = vmatprep.subr.mxu0 0.0
    %258 = vmatpush1.msra.mxu0 %v238
    %259 = vmatprep.subr.mxu0 0.0
    %260 = vmatpush1.msra.mxu0 %v237
    %261 = vmatprep.subr.mxu0 0.0
    %262 = vmatpush1.msra.mxu0 %v236
    %263 = vmatprep.subr.mxu0 0.0
    %264 = vmatpush1.msra.mxu0 %v235
    %265 = vmatprep.subr.mxu0 0.0
    %266 = vmatpush1.msra.mxu0 %v234
    %267 = vmatprep.subr.mxu0 0.0
    %268 = vmatpush1.msra.mxu0 %v233
    %269 = vmatprep.subr.mxu0 0.0
    %270 = vmatpush1.msra.mxu0 %v232
    %271 = vmatprep.subr.mxu0 0.0
    %272 = vmatpush1.msra.mxu0 %v231
    %273 = vmatprep.subr.mxu0 0.0
    %274 = vmatpush1.msra.mxu0 %v230
    %275 = vmatprep.subr.mxu0 0.0
    %276 = vmatpush1.msra.mxu0 %v229
    %277 = vmatprep.subr.mxu0 0.0
    %278 = vmatpush2.msra.mxu0 0.0
    %279 = vmatprep.subr.mxu0 0.0
    %280 = vmatpush2.msra.mxu0 0.0
    %281 = vmatprep.subr.mxu0 0.0
    %282 = vmatpush2.msra.mxu0 0.0
    %283 = vmatprep.subr.mxu0 0.0
    %284 = vmatpush2.msra.mxu0 0.0
    %285 = vmatprep.subr.mxu0 0.0
    %286 = vmatpush2.msra.mxu0 0.0
    %287 = vmatprep.subr.mxu0 0.0
    %288 = vmatpush2.msra.mxu0 0.0
    %289 = vmatprep.subr.mxu0 0.0
    %290 = vmatpush2.msra.mxu0 0.0
    %291 = vmatprep.subr.mxu0 0.0
    %292 = vmatpush2.msra.mxu0 0.0
    %293 = vmatprep.subr.mxu0 0.0
    %294 = vmatpush2.msra.mxu0 0.0
    %295 = vmatprep.subr.mxu0 0.0
    %296 = vmatpush2.msra.mxu0 0.0
    %297 = vmatprep.subr.mxu0 0.0
    %298 = vmatpush2.msra.mxu0 0.0
    %299 = vmatprep.subr.mxu0 0.0
    %300 = vmatpush2.msra.mxu0 0.0
    %301 = vmatprep.subr.mxu0 0.0
    %302 = vmatpush2.msra.mxu0 0.0
    %303 = vmatprep.subr.mxu0 0.0
    %304 = vmatpush2.msra.mxu0 0.0
    %305 = vmatprep.subr.mxu0 0.0
    %306 = vmatpush2.msra.mxu0 0.0
    %307 = vmatprep.subr.mxu0 0.0
    %308 = vmatpush2.msra.mxu0 0.0
    %309 = vmatprep.mubr.f32.mxu0 0.0
    %310 = vmatmul.mubr.f32.gmra.mxu0 %v225
    %v311 = vpop.f32.mrf.mxu0
    %v312 = vadd.f32 0.0, %v311
    %v313 = vpop.f32.mrf.mxu0
    %314 = vdwg.mxu0
    %315 = vst [vmem:[#allocation2 + $0x2] sm:$0x1] %v312
    %v316 = vld [vmem:[#allocation3] sm:$0xff]
    %v317 = vld [vmem:[#allocation3 + $0x8] sm:$0xff]
    %v318 = vld [vmem:[#allocation3 + $0x10] sm:$0xff]
    %v319 = vld [vmem:[#allocation3 + $0x18] sm:$0xff]
    %v320 = vld [vmem:[#allocation3 + $0x20] sm:$0xff]
    %v321 = vld [vmem:[#allocation3 + $0x28] sm:$0xff]
    %v322 = vld [vmem:[#allocation3 + $0x30] sm:$0xff]
    %v323 = vld [vmem:[#allocation3 + $0x38] sm:$0xff]
    %v324 = vld [vmem:[#allocation3 + $0x40] sm:$0xff]
    %v325 = vld [vmem:[#allocation3 + $0x48] sm:$0xff]
    %v326 = vld [vmem:[#allocation3 + $0x50] sm:$0xff]
    %v327 = vld [vmem:[#allocation3 + $0x58] sm:$0xff]
    %v328 = vld [vmem:[#allocation3 + $0x60] sm:$0xff]
    %v329 = vld [vmem:[#allocation3 + $0x68] sm:$0xff]
    %v330 = vld [vmem:[#allocation3 + $0x70] sm:$0xff]
    %v331 = vld [vmem:[#allocation3 + $0x78] sm:$0xff]
    %332 = vmatprep.subr.mxu0 0.0
    %333 = vmatpush1.msra.mxu0 %v331
    %334 = vmatprep.subr.mxu0 0.0
    %335 = vmatpush1.msra.mxu0 %v330
    %336 = vmatprep.subr.mxu0 0.0
    %337 = vmatpush1.msra.mxu0 %v329
    %338 = vmatprep.subr.mxu0 0.0
    %339 = vmatpush1.msra.mxu0 %v328
    %340 = vmatprep.subr.mxu0 0.0
    %341 = vmatpush1.msra.mxu0 %v327
    %342 = vmatprep.subr.mxu0 0.0
    %343 = vmatpush1.msra.mxu0 %v326
    %344 = vmatprep.subr.mxu0 0.0
    %345 = vmatpush1.msra.mxu0 %v325
    %346 = vmatprep.subr.mxu0 0.0
    %347 = vmatpush1.msra.mxu0 %v324
    %348 = vmatprep.subr.mxu0 0.0
    %349 = vmatpush1.msra.mxu0 %v323
    %350 = vmatprep.subr.mxu0 0.0
    %351 = vmatpush1.msra.mxu0 %v322
    %352 = vmatprep.subr.mxu0 0.0
    %353 = vmatpush1.msra.mxu0 %v321
    %354 = vmatprep.subr.mxu0 0.0
    %355 = vmatpush1.msra.mxu0 %v320
    %356 = vmatprep.subr.mxu0 0.0
    %357 = vmatpush1.msra.mxu0 %v319
    %358 = vmatprep.subr.mxu0 0.0
    %359 = vmatpush1.msra.mxu0 %v318
    %360 = vmatprep.subr.mxu0 0.0
    %361 = vmatpush1.msra.mxu0 %v317
    %362 = vmatprep.subr.mxu0 0.0
    %363 = vmatpush1.msra.mxu0 %v316
    %364 = vmatprep.subr.mxu0 0.0
    %365 = vmatpush2.msra.mxu0 0.0
    %366 = vmatprep.subr.mxu0 0.0
    %367 = vmatpush2.msra.mxu0 0.0
    %368 = vmatprep.subr.mxu0 0.0
    %369 = vmatpush2.msra.mxu0 0.0
    %370 = vmatprep.subr.mxu0 0.0
    %371 = vmatpush2.msra.mxu0 0.0
    %372 = vmatprep.subr.mxu0 0.0
    %373 = vmatpush2.msra.mxu0 0.0
    %374 = vmatprep.subr.mxu0 0.0
    %375 = vmatpush2.msra.mxu0 0.0
    %376 = vmatprep.subr.mxu0 0.0
    %377 = vmatpush2.msra.mxu0 0.0
    %378 = vmatprep.subr.mxu0 0.0
    %379 = vmatpush2.msra.mxu0 0.0
    %380 = vmatprep.subr.mxu0 0.0
    %381 = vmatpush2.msra.mxu0 0.0
    %382 = vmatprep.subr.mxu0 0.0
    %383 = vmatpush2.msra.mxu0 0.0
    %384 = vmatprep.subr.mxu0 0.0
    %385 = vmatpush2.msra.mxu0 0.0
    %386 = vmatprep.subr.mxu0 0.0
    %387 = vmatpush2.msra.mxu0 0.0
    %388 = vmatprep.subr.mxu0 0.0
    %389 = vmatpush2.msra.mxu0 0.0
    %390 = vmatprep.subr.mxu0 0.0
    %391 = vmatpush2.msra.mxu0 0.0
    %392 = vmatprep.subr.mxu0 0.0
    %393 = vmatpush2.msra.mxu0 0.0
    %394 = vmatprep.subr.mxu0 0.0
    %395 = vmatpush2.msra.mxu0 0.0
    %396 = vmatprep.mubr.f32.mxu0 0.0
    %397 = vmatmul.mubr.f32.gmra.mxu0 %v312
    %v398 = vpop.f32.mrf.mxu0
    %v399 = vadd.f32 0.0, %v398
    %v400 = vpop.f32.mrf.mxu0
    %401 = vdwg.mxu0
    %402 = vst [vmem:[#allocation2 + $0x3] sm:$0x1] %v399
    %v403 = vld [vmem:[#allocation3] sm:$0xff]
    %v404 = vld [vmem:[#allocation3 + $0x8] sm:$0xff]
    %v405 = vld [vmem:[#allocation3 + $0x10] sm:$0xff]
    %v406 = vld [vmem:[#allocation3 + $0x18] sm:$0xff]
    %v407 = vld [vmem:[#allocation3 + $0x20] sm:$0xff]
    %v408 = vld [vmem:[#allocation3 + $0x28] sm:$0xff]
    %v409 = vld [vmem:[#allocation3 + $0x30] sm:$0xff]
    %v410 = vld [vmem:[#allocation3 + $0x38] sm:$0xff]
    %v411 = vld [vmem:[#allocation3 + $0x40] sm:$0xff]
    %v412 = vld [vmem:[#allocation3 + $0x48] sm:$0xff]
    %v413 = vld [vmem:[#allocation3 + $0x50] sm:$0xff]
    %v414 = vld [vmem:[#allocation3 + $0x58] sm:$0xff]
    %v415 = vld [vmem:[#allocation3 + $0x60] sm:$0xff]
    %v416 = vld [vmem:[#allocation3 + $0x68] sm:$0xff]
    %v417 = vld [vmem:[#allocation3 + $0x70] sm:$0xff]
    %v418 = vld [vmem:[#allocation3 + $0x78] sm:$0xff]
    %419 = vmatprep.subr.mxu0 0.0
    %420 = vmatpush1.msra.mxu0 %v418
    %421 = vmatprep.subr.mxu0 0.0
    %422 = vmatpush1.msra.mxu0 %v417
    %423 = vmatprep.subr.mxu0 0.0
    %424 = vmatpush1.msra.mxu0 %v416
    %425 = vmatprep.subr.mxu0 0.0
    %426 = vmatpush1.msra.mxu0 %v415
    %427 = vmatprep.subr.mxu0 0.0
    %428 = vmatpush1.msra.mxu0 %v414
    %429 = vmatprep.subr.mxu0 0.0
    %430 = vmatpush1.msra.mxu0 %v413
    %431 = vmatprep.subr.mxu0 0.0
    %432 = vmatpush1.msra.mxu0 %v412
    %433 = vmatprep.subr.mxu0 0.0
    %434 = vmatpush1.msra.mxu0 %v411
    %435 = vmatprep.subr.mxu0 0.0
    %436 = vmatpush1.msra.mxu0 %v410
    %437 = vmatprep.subr.mxu0 0.0
    %438 = vmatpush1.msra.mxu0 %v409
    %439 = vmatprep.subr.mxu0 0.0
    %440 = vmatpush1.msra.mxu0 %v408
    %441 = vmatprep.subr.mxu0 0.0
    %442 = vmatpush1.msra.mxu0 %v407
    %443 = vmatprep.subr.mxu0 0.0
    %444 = vmatpush1.msra.mxu0 %v406
    %445 = vmatprep.subr.mxu0 0.0
    %446 = vmatpush1.msra.mxu0 %v405
    %447 = vmatprep.subr.mxu0 0.0
    %448 = vmatpush1.msra.mxu0 %v404
    %449 = vmatprep.subr.mxu0 0.0
    %450 = vmatpush1.msra.mxu0 %v403
    %451 = vmatprep.subr.mxu0 0.0
    %452 = vmatpush2.msra.mxu0 0.0
    %453 = vmatprep.subr.mxu0 0.0
    %454 = vmatpush2.msra.mxu0 0.0
    %455 = vmatprep.subr.mxu0 0.0
    %456 = vmatpush2.msra.mxu0 0.0
    %457 = vmatprep.subr.mxu0 0.0
    %458 = vmatpush2.msra.mxu0 0.0
    %459 = vmatprep.subr.mxu0 0.0
    %460 = vmatpush2.msra.mxu0 0.0
    %461 = vmatprep.subr.mxu0 0.0
    %462 = vmatpush2.msra.mxu0 0.0
    %463 = vmatprep.subr.mxu0 0.0
    %464 = vmatpush2.msra.mxu0 0.0
    %465 = vmatprep.subr.mxu0 0.0
    %466 = vmatpush2.msra.mxu0 0.0
    %467 = vmatprep.subr.mxu0 0.0
    %468 = vmatpush2.msra.mxu0 0.0
    %469 = vmatprep.subr.mxu0 0.0
    %470 = vmatpush2.msra.mxu0 0.0
    %471 = vmatprep.subr.mxu0 0.0
    %472 = vmatpush2.msra.mxu0 0.0
    %473 = vmatprep.subr.mxu0 0.0
    %474 = vmatpush2.msra.mxu0 0.0
    %475 = vmatprep.subr.mxu0 0.0
    %476 = vmatpush2.msra.mxu0 0.0
    %477 = vmatprep.subr.mxu0 0.0
    %478 = vmatpush2.msra.mxu0 0.0
    %479 = vmatprep.subr.mxu0 0.0
    %480 = vmatpush2.msra.mxu0 0.0
    %481 = vmatprep.subr.mxu0 0.0
    %482 = vmatpush2.msra.mxu0 0.0
    %483 = vmatprep.mubr.f32.mxu0 0.0
    %484 = vmatmul.mubr.f32.gmra.mxu0 %v399
    %v485 = vpop.f32.mrf.mxu0
    %v486 = vadd.f32 0.0, %v485
    %v487 = vpop.f32.mrf.mxu0
    %488 = vdwg.mxu0
    %489 = vst [vmem:[#allocation2 + $0x4] sm:$0x1] %v486
    %v490 = vld [vmem:[#allocation3] sm:$0xff]
    %v491 = vld [vmem:[#allocation3 + $0x8] sm:$0xff]
    %v492 = vld [vmem:[#allocation3 + $0x10] sm:$0xff]
    %v493 = vld [vmem:[#allocation3 + $0x18] sm:$0xff]
    %v494 = vld [vmem:[#allocation3 + $0x20] sm:$0xff]
    %v495 = vld [vmem:[#allocation3 + $0x28] sm:$0xff]
    %v496 = vld [vmem:[#allocation3 + $0x30] sm:$0xff]
    %v497 = vld [vmem:[#allocation3 + $0x38] sm:$0xff]
    %v498 = vld [vmem:[#allocation3 + $0x40] sm:$0xff]
    %v499 = vld [vmem:[#allocation3 + $0x48] sm:$0xff]
    %v500 = vld [vmem:[#allocation3 + $0x50] sm:$0xff]
    %v501 = vld [vmem:[#allocation3 + $0x58] sm:$0xff]
    %v502 = vld [vmem:[#allocation3 + $0x60] sm:$0xff]
    %v503 = vld [vmem:[#allocation3 + $0x68] sm:$0xff]
    %v504 = vld [vmem:[#allocation3 + $0x70] sm:$0xff]
    %v505 = vld [vmem:[#allocation3 + $0x78] sm:$0xff]
    %506 = vmatprep.subr.mxu0 0.0
    %507 = vmatpush1.msra.mxu0 %v505
    %508 = vmatprep.subr.mxu0 0.0
    %509 = vmatpush1.msra.mxu0 %v504
    %510 = vmatprep.subr.mxu0 0.0
    %511 = vmatpush1.msra.mxu0 %v503
    %512 = vmatprep.subr.mxu0 0.0
    %513 = vmatpush1.msra.mxu0 %v502
    %514 = vmatprep.subr.mxu0 0.0
    %515 = vmatpush1.msra.mxu0 %v501
    %516 = vmatprep.subr.mxu0 0.0
    %517 = vmatpush1.msra.mxu0 %v500
    %518 = vmatprep.subr.mxu0 0.0
    %519 = vmatpush1.msra.mxu0 %v499
    %520 = vmatprep.subr.mxu0 0.0
    %521 = vmatpush1.msra.mxu0 %v498
    %522 = vmatprep.subr.mxu0 0.0
    %523 = vmatpush1.msra.mxu0 %v497
    %524 = vmatprep.subr.mxu0 0.0
    %525 = vmatpush1.msra.mxu0 %v496
    %526 = vmatprep.subr.mxu0 0.0
    %527 = vmatpush1.msra.mxu0 %v495
    %528 = vmatprep.subr.mxu0 0.0
    %529 = vmatpush1.msra.mxu0 %v494
    %530 = vmatprep.subr.mxu0 0.0
    %531 = vmatpush1.msra.mxu0 %v493
    %532 = vmatprep.subr.mxu0 0.0
    %533 = vmatpush1.msra.mxu0 %v492
    %534 = vmatprep.subr.mxu0 0.0
    %535 = vmatpush1.msra.mxu0 %v491
    %536 = vmatprep.subr.mxu0 0.0
    %537 = vmatpush1.msra.mxu0 %v490
    %538 = vmatprep.subr.mxu0 0.0
    %539 = vmatpush2.msra.mxu0 0.0
    %540 = vmatprep.subr.mxu0 0.0
    %541 = vmatpush2.msra.mxu0 0.0
    %542 = vmatprep.subr.mxu0 0.0
    %543 = vmatpush2.msra.mxu0 0.0
    %544 = vmatprep.subr.mxu0 0.0
    %545 = vmatpush2.msra.mxu0 0.0
    %546 = vmatprep.subr.mxu0 0.0
    %547 = vmatpush2.msra.mxu0 0.0
    %548 = vmatprep.subr.mxu0 0.0
    %549 = vmatpush2.msra.mxu0 0.0
    %550 = vmatprep.subr.mxu0 0.0
    %551 = vmatpush2.msra.mxu0 0.0
    %552 = vmatprep.subr.mxu0 0.0
    %553 = vmatpush2.msra.mxu0 0.0
    %554 = vmatprep.subr.mxu0 0.0
    %555 = vmatpush2.msra.mxu0 0.0
    %556 = vmatprep.subr.mxu0 0.0
    %557 = vmatpush2.msra.mxu0 0.0
    %558 = vmatprep.subr.mxu0 0.0
    %559 = vmatpush2.msra.mxu0 0.0
    %560 = vmatprep.subr.mxu0 0.0
    %561 = vmatpush2.msra.mxu0 0.0
    %562 = vmatprep.subr.mxu0 0.0
    %563 = vmatpush2.msra.mxu0 0.0
    %564 = vmatprep.subr.mxu0 0.0
    %565 = vmatpush2.msra.mxu0 0.0
    %566 = vmatprep.subr.mxu0 0.0
    %567 = vmatpush2.msra.mxu0 0.0
    %568 = vmatprep.subr.mxu0 0.0
    %569 = vmatpush2.msra.mxu0 0.0
    %570 = vmatprep.mubr.f32.mxu0 0.0
    %571 = vmatmul.mubr.f32.gmra.mxu0 %v486
    %v572 = vpop.f32.mrf.mxu0
    %v573 = vadd.f32 0.0, %v572
    %v574 = vpop.f32.mrf.mxu0
    %575 = vdwg.mxu0
    %576 = vst [vmem:[#allocation2 + $0x5] sm:$0x1] %v573
    %v577 = vld [vmem:[#allocation3] sm:$0xff]
    %v578 = vld [vmem:[#allocation3 + $0x8] sm:$0xff]
    %v579 = vld [vmem:[#allocation3 + $0x10] sm:$0xff]
    %v580 = vld [vmem:[#allocation3 + $0x18] sm:$0xff]
    %v581 = vld [vmem:[#allocation3 + $0x20] sm:$0xff]
    %v582 = vld [vmem:[#allocation3 + $0x28] sm:$0xff]
    %v583 = vld [vmem:[#allocation3 + $0x30] sm:$0xff]
    %v584 = vld [vmem:[#allocation3 + $0x38] sm:$0xff]
    %v585 = vld [vmem:[#allocation3 + $0x40] sm:$0xff]
    %v586 = vld [vmem:[#allocation3 + $0x48] sm:$0xff]
    %v587 = vld [vmem:[#allocation3 + $0x50] sm:$0xff]
    %v588 = vld [vmem:[#allocation3 + $0x58] sm:$0xff]
    %v589 = vld [vmem:[#allocation3 + $0x60] sm:$0xff]
    %v590 = vld [vmem:[#allocation3 + $0x68] sm:$0xff]
    %v591 = vld [vmem:[#allocation3 + $0x70] sm:$0xff]
    %v592 = vld [vmem:[#allocation3 + $0x78] sm:$0xff]
    %593 = vmatprep.subr.mxu0 0.0
    %594 = vmatpush1.msra.mxu0 %v592
    %595 = vmatprep.subr.mxu0 0.0
    %596 = vmatpush1.msra.mxu0 %v591
    %597 = vmatprep.subr.mxu0 0.0
    %598 = vmatpush1.msra.mxu0 %v590
    %599 = vmatprep.subr.mxu0 0.0
    %600 = vmatpush1.msra.mxu0 %v589
    %601 = vmatprep.subr.mxu0 0.0
    %602 = vmatpush1.msra.mxu0 %v588
    %603 = vmatprep.subr.mxu0 0.0
    %604 = vmatpush1.msra.mxu0 %v587
    %605 = vmatprep.subr.mxu0 0.0
    %606 = vmatpush1.msra.mxu0 %v586
    %607 = vmatprep.subr.mxu0 0.0
    %608 = vmatpush1.msra.mxu0 %v585
    %609 = vmatprep.subr.mxu0 0.0
    %610 = vmatpush1.msra.mxu0 %v584
    %611 = vmatprep.subr.mxu0 0.0
    %612 = vmatpush1.msra.mxu0 %v583
    %613 = vmatprep.subr.mxu0 0.0
    %614 = vmatpush1.msra.mxu0 %v582
    %615 = vmatprep.subr.mxu0 0.0
    %616 = vmatpush1.msra.mxu0 %v581
    %617 = vmatprep.subr.mxu0 0.0
    %618 = vmatpush1.msra.mxu0 %v580
    %619 = vmatprep.subr.mxu0 0.0
    %620 = vmatpush1.msra.mxu0 %v579
    %621 = vmatprep.subr.mxu0 0.0
    %622 = vmatpush1.msra.mxu0 %v578
    %623 = vmatprep.subr.mxu0 0.0
    %624 = vmatpush1.msra.mxu0 %v577
    %625 = vmatprep.subr.mxu0 0.0
    %626 = vmatpush2.msra.mxu0 0.0
    %627 = vmatprep.subr.mxu0 0.0
    %628 = vmatpush2.msra.mxu0 0.0
    %629 = vmatprep.subr.mxu0 0.0
    %630 = vmatpush2.msra.mxu0 0.0
    %631 = vmatprep.subr.mxu0 0.0
    %632 = vmatpush2.msra.mxu0 0.0
    %633 = vmatprep.subr.mxu0 0.0
    %634 = vmatpush2.msra.mxu0 0.0
    %635 = vmatprep.subr.mxu0 0.0
    %636 = vmatpush2.msra.mxu0 0.0
    %637 = vmatprep.subr.mxu0 0.0
    %638 = vmatpush2.msra.mxu0 0.0
    %639 = vmatprep.subr.mxu0 0.0
    %640 = vmatpush2.msra.mxu0 0.0
    %641 = vmatprep.subr.mxu0 0.0
    %642 = vmatpush2.msra.mxu0 0.0
    %643 = vmatprep.subr.mxu0 0.0
    %644 = vmatpush2.msra.mxu0 0.0
    %645 = vmatprep.subr.mxu0 0.0
    %646 = vmatpush2.msra.mxu0 0.0
    %647 = vmatprep.subr.mxu0 0.0
    %648 = vmatpush2.msra.mxu0 0.0
    %649 = vmatprep.subr.mxu0 0.0
    %650 = vmatpush2.msra.mxu0 0.0
    %651 = vmatprep.subr.mxu0 0.0
    %652 = vmatpush2.msra.mxu0 0.0
    %653 = vmatprep.subr.mxu0 0.0
    %654 = vmatpush2.msra.mxu0 0.0
    %655 = vmatprep.subr.mxu0 0.0
    %656 = vmatpush2.msra.mxu0 0.0
    %657 = vmatprep.mubr.f32.mxu0 0.0
    %658 = vmatmul.mubr.f32.gmra.mxu0 %v573
    %v659 = vpop.f32.mrf.mxu0
    %v660 = vadd.f32 0.0, %v659
    %v661 = vpop.f32.mrf.mxu0
    %662 = vdwg.mxu0
    %663 = vst [vmem:[#allocation2 + $0x6] sm:$0x1] %v660
    %v664 = vld [vmem:[#allocation3] sm:$0xff]
    %v665 = vld [vmem:[#allocation3 + $0x8] sm:$0xff]
    %v666 = vld [vmem:[#allocation3 + $0x10] sm:$0xff]
    %v667 = vld [vmem:[#allocation3 + $0x18] sm:$0xff]
    %v668 = vld [vmem:[#allocation3 + $0x20] sm:$0xff]
    %v669 = vld [vmem:[#allocation3 + $0x28] sm:$0xff]
    %v670 = vld [vmem:[#allocation3 + $0x30] sm:$0xff]
    %v671 = vld [vmem:[#allocation3 + $0x38] sm:$0xff]
    %v672 = vld [vmem:[#allocation3 + $0x40] sm:$0xff]
    %v673 = vld [vmem:[#allocation3 + $0x48] sm:$0xff]
    %v674 = vld [vmem:[#allocation3 + $0x50] sm:$0xff]
    %v675 = vld [vmem:[#allocation3 + $0x58] sm:$0xff]
    %v676 = vld [vmem:[#allocation3 + $0x60] sm:$0xff]
    %v677 = vld [vmem:[#allocation3 + $0x68] sm:$0xff]
    %v678 = vld [vmem:[#allocation3 + $0x70] sm:$0xff]
    %v679 = vld [vmem:[#allocation3 + $0x78] sm:$0xff]
    %680 = vmatprep.subr.mxu0 0.0
    %681 = vmatpush1.msra.mxu0 %v679
    %682 = vmatprep.subr.mxu0 0.0
    %683 = vmatpush1.msra.mxu0 %v678
    %684 = vmatprep.subr.mxu0 0.0
    %685 = vmatpush1.msra.mxu0 %v677
    %686 = vmatprep.subr.mxu0 0.0
    %687 = vmatpush1.msra.mxu0 %v676
    %688 = vmatprep.subr.mxu0 0.0
    %689 = vmatpush1.msra.mxu0 %v675
    %690 = vmatprep.subr.mxu0 0.0
    %691 = vmatpush1.msra.mxu0 %v674
    %692 = vmatprep.subr.mxu0 0.0
    %693 = vmatpush1.msra.mxu0 %v673
    %694 = vmatprep.subr.mxu0 0.0
    %695 = vmatpush1.msra.mxu0 %v672
    %696 = vmatprep.subr.mxu0 0.0
    %697 = vmatpush1.msra.mxu0 %v671
    %698 = vmatprep.subr.mxu0 0.0
    %699 = vmatpush1.msra.mxu0 %v670
    %700 = vmatprep.subr.mxu0 0.0
    %701 = vmatpush1.msra.mxu0 %v669
    %702 = vmatprep.subr.mxu0 0.0
    %703 = vmatpush1.msra.mxu0 %v668
    %704 = vmatprep.subr.mxu0 0.0
    %705 = vmatpush1.msra.mxu0 %v667
    %706 = vmatprep.subr.mxu0 0.0
    %707 = vmatpush1.msra.mxu0 %v666
    %708 = vmatprep.subr.mxu0 0.0
    %709 = vmatpush1.msra.mxu0 %v665
    %710 = vmatprep.subr.mxu0 0.0
    %711 = vmatpush1.msra.mxu0 %v664
    %712 = vmatprep.subr.mxu0 0.0
    %713 = vmatpush2.msra.mxu0 0.0
    %714 = vmatprep.subr.mxu0 0.0
    %715 = vmatpush2.msra.mxu0 0.0
    %716 = vmatprep.subr.mxu0 0.0
    %717 = vmatpush2.msra.mxu0 0.0
    %718 = vmatprep.subr.mxu0 0.0
    %719 = vmatpush2.msra.mxu0 0.0
    %720 = vmatprep.subr.mxu0 0.0
    %721 = vmatpush2.msra.mxu0 0.0
    %722 = vmatprep.subr.mxu0 0.0
    %723 = vmatpush2.msra.mxu0 0.0
    %724 = vmatprep.subr.mxu0 0.0
    %725 = vmatpush2.msra.mxu0 0.0
    %726 = vmatprep.subr.mxu0 0.0
    %727 = vmatpush2.msra.mxu0 0.0
    %728 = vmatprep.subr.mxu0 0.0
    %729 = vmatpush2.msra.mxu0 0.0
    %730 = vmatprep.subr.mxu0 0.0
    %731 = vmatpush2.msra.mxu0 0.0
    %732 = vmatprep.subr.mxu0 0.0
    %733 = vmatpush2.msra.mxu0 0.0
    %734 = vmatprep.subr.mxu0 0.0
    %735 = vmatpush2.msra.mxu0 0.0
    %736 = vmatprep.subr.mxu0 0.0
    %737 = vmatpush2.msra.mxu0 0.0
    %738 = vmatprep.subr.mxu0 0.0
    %739 = vmatpush2.msra.mxu0 0.0
    %740 = vmatprep.subr.mxu0 0.0
    %741 = vmatpush2.msra.mxu0 0.0
    %742 = vmatprep.subr.mxu0 0.0
    %743 = vmatpush2.msra.mxu0 0.0
    %744 = vmatprep.mubr.f32.mxu0 0.0
    %745 = vmatmul.mubr.f32.gmra.mxu0 %v660
    %v746 = vpop.f32.mrf.mxu0
    %v747 = vadd.f32 0.0, %v746
    %v748 = vpop.f32.mrf.mxu0
    %749 = vdwg.mxu0
    %750 = vst [vmem:[#allocation2 + $0x7] sm:$0x1] %v747
    %v751 = vld [vmem:[#allocation3] sm:$0xff]
    %v752 = vld [vmem:[#allocation3 + $0x8] sm:$0xff]
    %v753 = vld [vmem:[#allocation3 + $0x10] sm:$0xff]
    %v754 = vld [vmem:[#allocation3 + $0x18] sm:$0xff]
    %v755 = vld [vmem:[#allocation3 + $0x20] sm:$0xff]
    %v756 = vld [vmem:[#allocation3 + $0x28] sm:$0xff]
    %v757 = vld [vmem:[#allocation3 + $0x30] sm:$0xff]
    %v758 = vld [vmem:[#allocation3 + $0x38] sm:$0xff]
    %v759 = vld [vmem:[#allocation3 + $0x40] sm:$0xff]
    %v760 = vld [vmem:[#allocation3 + $0x48] sm:$0xff]
    %v761 = vld [vmem:[#allocation3 + $0x50] sm:$0xff]
    %v762 = vld [vmem:[#allocation3 + $0x58] sm:$0xff]
    %v763 = vld [vmem:[#allocation3 + $0x60] sm:$0xff]
    %v764 = vld [vmem:[#allocation3 + $0x68] sm:$0xff]
    %v765 = vld [vmem:[#allocation3 + $0x70] sm:$0xff]
    %v766 = vld [vmem:[#allocation3 + $0x78] sm:$0xff]
    %767 = vmatprep.subr.mxu0 0.0
    %768 = vmatpush1.msra.mxu0 %v766
    %769 = vmatprep.subr.mxu0 0.0
    %770 = vmatpush1.msra.mxu0 %v765
    %771 = vmatprep.subr.mxu0 0.0
    %772 = vmatpush1.msra.mxu0 %v764
    %773 = vmatprep.subr.mxu0 0.0
    %774 = vmatpush1.msra.mxu0 %v763
    %775 = vmatprep.subr.mxu0 0.0
    %776 = vmatpush1.msra.mxu0 %v762
    %777 = vmatprep.subr.mxu0 0.0
    %778 = vmatpush1.msra.mxu0 %v761
    %779 = vmatprep.subr.mxu0 0.0
    %780 = vmatpush1.msra.mxu0 %v760
    %781 = vmatprep.subr.mxu0 0.0
    %782 = vmatpush1.msra.mxu0 %v759
    %783 = vmatprep.subr.mxu0 0.0
    %784 = vmatpush1.msra.mxu0 %v758
    %785 = vmatprep.subr.mxu0 0.0
    %786 = vmatpush1.msra.mxu0 %v757
    %787 = vmatprep.subr.mxu0 0.0
    %788 = vmatpush1.msra.mxu0 %v756
    %789 = vmatprep.subr.mxu0 0.0
    %790 = vmatpush1.msra.mxu0 %v755
    %791 = vmatprep.subr.mxu0 0.0
    %792 = vmatpush1.msra.mxu0 %v754
    %793 = vmatprep.subr.mxu0 0.0
    %794 = vmatpush1.msra.mxu0 %v753
    %795 = vmatprep.subr.mxu0 0.0
    %796 = vmatpush1.msra.mxu0 %v752
    %797 = vmatprep.subr.mxu0 0.0
    %798 = vmatpush1.msra.mxu0 %v751
    %799 = vmatprep.subr.mxu0 0.0
    %800 = vmatpush2.msra.mxu0 0.0
    %801 = vmatprep.subr.mxu0 0.0
    %802 = vmatpush2.msra.mxu0 0.0
    %803 = vmatprep.subr.mxu0 0.0
    %804 = vmatpush2.msra.mxu0 0.0
    %805 = vmatprep.subr.mxu0 0.0
    %806 = vmatpush2.msra.mxu0 0.0
    %807 = vmatprep.subr.mxu0 0.0
    %808 = vmatpush2.msra.mxu0 0.0
    %809 = vmatprep.subr.mxu0 0.0
    %810 = vmatpush2.msra.mxu0 0.0
    %811 = vmatprep.subr.mxu0 0.0
    %812 = vmatpush2.msra.mxu0 0.0
    %813 = vmatprep.subr.mxu0 0.0
    %814 = vmatpush2.msra.mxu0 0.0
    %815 = vmatprep.subr.mxu0 0.0
    %816 = vmatpush2.msra.mxu0 0.0
    %817 = vmatprep.subr.mxu0 0.0
    %818 = vmatpush2.msra.mxu0 0.0
    %819 = vmatprep.subr.mxu0 0.0
    %820 = vmatpush2.msra.mxu0 0.0
    %821 = vmatprep.subr.mxu0 0.0
    %822 = vmatpush2.msra.mxu0 0.0
    %823 = vmatprep.subr.mxu0 0.0
    %824 = vmatpush2.msra.mxu0 0.0
    %825 = vmatprep.subr.mxu0 0.0
    %826 = vmatpush2.msra.mxu0 0.0
    %827 = vmatprep.subr.mxu0 0.0
    %828 = vmatpush2.msra.mxu0 0.0
    %829 = vmatprep.subr.mxu0 0.0
    %830 = vmatpush2.msra.mxu0 0.0
    %831 = vmatprep.mubr.f32.mxu0 0.0
    %832 = vmatmul.mubr.f32.gmra.mxu0 %v747
    %v833 = vpop.f32.mrf.mxu0
    %v834 = vadd.f32 0.0, %v833
    %v835 = vpop.f32.mrf.mxu0
    %836 = vdwg.mxu0
    %837 = vst [vmem:[#allocation2 + $0x8] sm:$0x1] %v834
    %v838 = vld [vmem:[#allocation8] sm:$0xff]
    %v839 = vld [vmem:[#allocation2] sm:$0xff]
    %v840 = vld [vmem:[#allocation2 + $0x8] sm:$0xff]
    %vm841 = vcmask 130048
    %v843 = vsel %vm841, %v838, 0
    %845 = vmatprep.subr.mxu0 0.0
    %846 = vmatpush1.msra.mxu0 0.0
    %847 = vmatprep.subr.mxu0 0.0
    %848 = vmatpush1.msra.mxu0 0.0
    %849 = vmatprep.subr.mxu0 0.0
    %850 = vmatpush1.msra.mxu0 0.0
    %851 = vmatprep.subr.mxu0 0.0
    %852 = vmatpush1.msra.mxu0 0.0
    %853 = vmatprep.subr.mxu0 0.0
    %854 = vmatpush1.msra.mxu0 0.0
    %855 = vmatprep.subr.mxu0 0.0
    %856 = vmatpush1.msra.mxu0 0.0
    %857 = vmatprep.subr.mxu0 0.0
    %858 = vmatpush1.msra.mxu0 0.0
    %859 = vmatprep.subr.mxu0 0.0
    %860 = vmatpush1.msra.mxu0 0.0
    %861 = vmatprep.subr.mxu0 0.0
    %862 = vmatpush1.msra.mxu0 0.0
    %863 = vmatprep.subr.mxu0 0.0
    %864 = vmatpush1.msra.mxu0 0.0
    %865 = vmatprep.subr.mxu0 0.0
    %866 = vmatpush1.msra.mxu0 0.0
    %867 = vmatprep.subr.mxu0 0.0
    %868 = vmatpush1.msra.mxu0 0.0
    %869 = vmatprep.subr.mxu0 0.0
    %870 = vmatpush1.msra.mxu0 0.0
    %871 = vmatprep.subr.mxu0 0.0
    %872 = vmatpush1.msra.mxu0 0.0
    %873 = vmatprep.subr.mxu0 0.0
    %874 = vmatpush1.msra.mxu0 %v840
    %875 = vmatprep.subr.mxu0 0.0
    %876 = vmatpush1.msra.mxu0 %v839
    %877 = vmatprep.subr.mxu0 0.0
    %878 = vmatpush2.msra.mxu0 0.0
    %879 = vmatprep.subr.mxu0 0.0
    %880 = vmatpush2.msra.mxu0 0.0
    %881 = vmatprep.subr.mxu0 0.0
    %882 = vmatpush2.msra.mxu0 0.0
    %883 = vmatprep.subr.mxu0 0.0
    %884 = vmatpush2.msra.mxu0 0.0
    %885 = vmatprep.subr.mxu0 0.0
    %886 = vmatpush2.msra.mxu0 0.0
    %887 = vmatprep.subr.mxu0 0.0
    %888 = vmatpush2.msra.mxu0 0.0
    %889 = vmatprep.subr.mxu0 0.0
    %890 = vmatpush2.msra.mxu0 0.0
    %891 = vmatprep.subr.mxu0 0.0
    %892 = vmatpush2.msra.mxu0 0.0
    %893 = vmatprep.subr.mxu0 0.0
    %894 = vmatpush2.msra.mxu0 0.0
    %895 = vmatprep.subr.mxu0 0.0
    %896 = vmatpush2.msra.mxu0 0.0
    %897 = vmatprep.subr.mxu0 0.0
    %898 = vmatpush2.msra.mxu0 0.0
    %899 = vmatprep.subr.mxu0 0.0
    %900 = vmatpush2.msra.mxu0 0.0
    %901 = vmatprep.subr.mxu0 0.0
    %902 = vmatpush2.msra.mxu0 0.0
    %903 = vmatprep.subr.mxu0 0.0
    %904 = vmatpush2.msra.mxu0 0.0
    %905 = vmatprep.subr.mxu0 0.0
    %906 = vmatpush2.msra.mxu0 0.0
    %907 = vmatprep.subr.mxu0 0.0
    %908 = vmatpush2.msra.mxu0 0.0
    %909 = vmatprep.mubr.f32.mxu0 0.0
    %910 = vmatmul.mubr.f32.gmra.mxu0 %v843
    %v911 = vpop.f32.mrf.mxu0
    %v912 = vadd.f32 0.0, %v911
    %v913 = vpop.f32.mrf.mxu0
    %914 = vdwg.mxu0
    %915 = vst [vmem:[#allocation9] sm:$0xff] %v912
    // Predicated region
    $region26: #{tpu_custom_call.1} parent=1 // pred_check
      _
    $region27: #{tpu_custom_call.1} parent=1 // pred_check_branch
      %917 = sbr.rel (0) target = $region29
    $region28: #{tpu_custom_call.1} parent=1 // pred_region
      %s919 = ssub.s32 128, 128
      %920 = vsyncadd [#allocation5], %s919
      %s922 = sshll.u32 [#allocation9], 4
      %s923 = int_to_ptr.vmem [resolvable:$true] %s922
      %925 = dma.vmem_to_hbm [thread:$0]  %s923, 128, %s3, [#allocation5]
    $region29: #{tpu_custom_call.1} parent=1 // pred_fallthru
      _
    // Predicated region
    $region30: #{tpu_custom_call.1} parent=1 // pred_check
      _
    $region31: #{tpu_custom_call.1} parent=1 // pred_check_branch
      %927 = sbr.rel (0) target = $region33
    $region32: #{tpu_custom_call.1} parent=1 // pred_region
      %928 = dma.done [#allocation5], 128
    $region33: #{tpu_custom_call.1} parent=1 // pred_fallthru
      _
    %929 = vsyncpa [#allocation4], 1
    %930 = vsyncpa [#allocation7], 1
    %931 = vsyncpa [#allocation5], 1

</llo_original>
